<compile_context>
chip_gen: v5e
topology: v5e:2x2
jax: 0.10.0
libtpu: 0.0.40
codegen_flags: <defaults>
</compile_context>

<pallas_src>
import jax
import jax.numpy as jnp
from jax.experimental import pallas as pl
from jax.experimental.pallas import tpu as pltpu

_EPS = 1e-12  # torch.nn.functional.normalize default eps


def _rmsnorm_kernel(x_ref, gamma_ref, o_ref):
    # x_ref: (ROW_TILE, DIM), gamma_ref: (1, DIM) pre-scaled by sqrt(dim),
    # o_ref: (ROW_TILE, DIM).
    x = x_ref[...].astype(jnp.float32)
    sq_sum = jnp.sum(x * x, axis=-1, keepdims=True)           # (ROW_TILE, 1)
    # max(norm, eps) == sqrt(max(sq_sum, eps^2)); rsqrt lands on the EUP slot
    # and avoids a full-width VPU divide.
    inv = jax.lax.rsqrt(jnp.maximum(sq_sum, _EPS * _EPS))      # (ROW_TILE, 1)
    gamma = gamma_ref[...]                                     # (1, DIM) f32
    o_ref[...] = (x * inv * gamma).astype(o_ref.dtype)


def _vmem_capacity_bytes():
    try:
        info = pltpu.get_tpu_info()
        cap = getattr(info, "vmem_capacity_bytes", None)
        if cap:
            return int(cap)
    except Exception:
        pass
    # Conservative fallback = v7x per-TensorCore physical VMEM.
    return 64 * 1024 * 1024


def _pick_row_tile(rows, dim, itemsize, vmem_cap):
    # Sublane packing: f32 -> 8 rows/vreg, bf16 -> 16, int8/fp8 -> 32.
    sublane = 8 if itemsize >= 4 else (16 if itemsize == 2 else 32)
    # Double-buffered x + out tiles in I/O dtype, plus f32 temporaries
    # (cast x and the f32 product) inside the kernel body.
    per_row_bytes = (4 * itemsize + 2 * 4) * dim
    budget = vmem_cap // 4  # ample headroom for the pipeline + temporaries
    tile = max(sublane, min(1024, budget // max(per_row_bytes, 1)))
    tile = max(sublane, (tile // sublane) * sublane)
    # No point tiling beyond the (sublane-padded) row count.
    rows_padded_min = ((rows + sublane - 1) // sublane) * sublane
    return min(tile, rows_padded_min)


def rmsnorm(x, gamma):
    """RMSNorm over the last axis of x. gamma has shape (dim,)."""
    orig_shape = x.shape
    dim = orig_shape[-1]
    assert gamma.shape == (dim,)
    scale = float(dim) ** 0.5

    rows = 1
    for s in orig_shape[:-1]:
        rows *= s
    x2d = x.reshape(rows, dim)
    # Fold the sqrt(dim) scale into gamma once, in f32, outside the kernel.
    gamma2d = (gamma.astype(jnp.float32) * scale).reshape(1, dim)

    itemsize = jnp.dtype(x.dtype).itemsize
    vmem_cap = _vmem_capacity_bytes()
    row_tile = _pick_row_tile(rows, dim, itemsize, vmem_cap)

    # Pad ragged row counts up to a tile multiple (zero rows are safe under
    # the eps clamp: inv stays finite) instead of shrinking to one giant tile.
    rows_padded = pl.cdiv(rows, row_tile) * row_tile
    if rows_padded != rows:
        x2d = jnp.pad(x2d, ((0, rows_padded - rows), (0, 0)))

    grid = (rows_padded // row_tile,)

    # Raise the scoped-VMEM limit enough for the chosen tile (default is only
    # 16/32 MiB), while staying well inside physical VMEM on every generation.
    needed_bytes = row_tile * dim * (4 * itemsize + 2 * 4) + 2 * dim * 4 + (1 << 20)
    vmem_limit = int(min(vmem_cap * 3 // 4, max(needed_bytes, 32 * 1024 * 1024)))

    cost = pl.CostEstimate(
        flops=4 * rows * dim,
        transcendentals=rows,
        bytes_accessed=2 * rows * dim * itemsize + dim * 4,
    )

    out2d = pl.pallas_call(
        _rmsnorm_kernel,
        out_shape=jax.ShapeDtypeStruct((rows_padded, dim), x.dtype),
        grid_spec=pltpu.PrefetchScalarGridSpec(
            num_scalar_prefetch=0,
            grid=grid,
            in_specs=[
                pl.BlockSpec((row_tile, dim), lambda i: (i, 0)),
                pl.BlockSpec((1, dim), lambda i: (0, 0)),
            ],
            out_specs=pl.BlockSpec((row_tile, dim), lambda i: (i, 0)),
        ),
        compiler_params=pltpu.CompilerParams(
            dimension_semantics=("parallel",),
            vmem_limit_bytes=vmem_limit,
        ),
        cost_estimate=cost,
    )(x2d, gamma2d)

    if rows_padded != rows:
        out2d = out2d[:rows]
    return out2d.reshape(orig_shape)


def _rmsnorm_ref(x, gamma):
    # Pure-JAX reference mirroring the PyTorch forward exactly.
    dim = x.shape[-1]
    scale = float(dim) ** 0.5
    norm = jnp.sqrt(jnp.sum(x.astype(jnp.float32) ** 2, axis=-1, keepdims=True))
    normalized = x / jnp.maximum(norm, _EPS)
    return normalized * scale * gamma


if __name__ == "__main__":
    key = jax.random.PRNGKey(0)
    batch, seq, dim = 2, 8, 32

    x = jax.random.normal(key, (batch, seq, dim), dtype=jnp.float32)
    # Deterministic parameter init matching nn.Parameter(torch.ones(dim)).
    gamma = jnp.ones((dim,), dtype=jnp.float32)

    out = rmsnorm(x, gamma)
    out = jax.block_until_ready(out)

    ref = _rmsnorm_ref(x, gamma)
    assert out.shape == x.shape
    assert jnp.allclose(out, ref, atol=1e-5, rtol=1e-5)

    print("KERNEL_OK")
</pallas_src>

<mosaic_0001>
module attributes {stable_mosaic.version = 11 : i64} {
  func.func @_rmsnorm_kernel(%arg0: i32, %arg1: memref<16x32xf32, #tpu.memory_space<vmem>>, %arg2: memref<1x32xf32, #tpu.memory_space<vmem>>, %arg3: memref<16x32xf32, #tpu.memory_space<vmem>>) attributes {dimension_semantics = [#tpu.dimension_semantics<parallel>], iteration_bounds = array<i64: 1>, scalar_prefetch = 0 : i64, scratch_operands = 0 : i64, tpu.core_type = #tpu.core_type<tc>, window_params = [{transform_indices = @transform_0, window_bounds = array<i64: 16, 32>}, {pipeline_mode = #tpu.pipeline_mode<synchronous>, transform_indices = @transform_1, window_bounds = array<i64: 1, 32>}, {transform_indices = @transform_2, window_bounds = array<i64: 16, 32>}]} {
    %c0 = arith.constant 0 : index
    %c0_0 = arith.constant 0 : index
    %0 = vector.load %arg1[%c0, %c0_0] : memref<16x32xf32, #tpu.memory_space<vmem>>, vector<16x32xf32>
    %1 = arith.mulf %0, %0 : vector<16x32xf32>
    %cst = arith.constant dense<0.000000e+00> : vector<16xf32>
    %2 = vector.multi_reduction <add>, %1, %cst [1] : vector<16x32xf32> to vector<16xf32>
    %3 = vector.shape_cast %2 : vector<16xf32> to vector<16x1xf32>
    %cst_1 = arith.constant 1.000000e-24 : f32
    %4 = vector.broadcast %cst_1 : f32 to vector<16x1xf32>
    %5 = arith.maximumf %3, %4 : vector<16x1xf32>
    %6 = math.rsqrt %5 : vector<16x1xf32>
    %c0_2 = arith.constant 0 : index
    %c0_3 = arith.constant 0 : index
    %7 = vector.load %arg2[%c0_2, %c0_3] : memref<1x32xf32, #tpu.memory_space<vmem>>, vector<1x32xf32>
    %8 = vector.broadcast %6 : vector<16x1xf32> to vector<16x32xf32>
    %9 = arith.mulf %0, %8 : vector<16x32xf32>
    %10 = vector.broadcast %7 : vector<1x32xf32> to vector<16x32xf32>
    %11 = arith.mulf %9, %10 : vector<16x32xf32>
    %c0_4 = arith.constant 0 : index
    %c0_5 = arith.constant 0 : index
    %12 = vector.load %arg3[%c0_4, %c0_5] : memref<16x32xf32, #tpu.memory_space<vmem>>, vector<16x32xf32>
    tpu.vector_store %arg3[%c0_4, %c0_5], %11 {strides = array<i32>} : memref<16x32xf32, #tpu.memory_space<vmem>>, vector<16x32xf32>,
    return
  }
  func.func @transform_0(%arg0: i32) -> (i32, i32) {
    %c0_i32 = arith.constant 0 : i32
    %c0_i32_0 = arith.constant 0 : i32
    return %arg0, %c0_i32 : i32, i32
  }
  func.func @transform_1(%arg0: i32) -> (i32, i32) {
    %c0_i32 = arith.constant 0 : i32
    %c0_i32_0 = arith.constant 0 : i32
    %c0_i32_1 = arith.constant 0 : i32
    return %c0_i32, %c0_i32_0 : i32, i32
  }
  func.func @transform_2(%arg0: i32) -> (i32, i32) {
    %c0_i32 = arith.constant 0 : i32
    %c0_i32_0 = arith.constant 0 : i32
    return %arg0, %c0_i32 : i32, i32
  }
}

</mosaic_0001>

<llo_original>
// kernel: tpu_custom_call.1
$region0: #{tpu_custom_call.1}
  #allocation0 [shape = 'u32[]', space=smem, size = 0x4, offset = 0x4, fixed_abs, tag = 'smem constant byte address 0x4 - core index']
  #allocation1 [shape = 'u32[72,128]{1,0:T(1,128)}', space=vmem, size = 0x9000, scoped, tag = 'internal scratch']
  %s0 = inlined_call_operand.hbm [shape: f32[16,32], index: 0, kind: input, shape index: {}]
  %s1 = inlined_call_operand.hbm [shape: f32[1,32], index: 1, kind: input, shape index: {}]
  %s2 = inlined_call_operand.hbm [shape: f32[16,32], index: 2, kind: output, shape index: {}]
  %s3 = sld [smem:[#allocation0]]
  $region26: #{tpu_custom_call.1} parent=0
    _
  %s5 = ssub.s32 1, %s3
  %s6 = scalar_select 0, %s5, %s3
  $region1: #{tpu_custom_call.1} parent=0
    #allocation2 [shape = 'u8[8192]{0}', space=vmem, size = 0x2000, scoped, tag = 'input window, operand 0, single buffered']
    #allocation3 [shape = 's32[1]{0}', space=sflag, size = 0x4, scoped, tag = 'scoped memory for tpu_custom_call.1']
    #allocation4 [shape = 's32[1]{0}', space=sflag, size = 0x4, scoped, tag = 'scoped memory for tpu_custom_call.1']
    #allocation5 [shape = 'u8[512]{0}', space=vmem, size = 0x400, scoped, tag = 'input window, operand 1, single buffered']
    #allocation6 [shape = 's32[1]{0}', space=sflag, size = 0x4, scoped, tag = 'scoped memory for tpu_custom_call.1']
    #allocation7 [shape = 'u8[8192]{0}', space=vmem, size = 0x2000, scoped, tag = 'output window, operand 0, single buffered']
    %7 = vsyncpa [#allocation3], 0
    %8 = vsyncpa [#allocation6], 0
    %9 = vsyncpa [#allocation4], 0
    // Predicated region
    $region2: #{tpu_custom_call.1} parent=1 // pred_check
      _
    $region3: #{tpu_custom_call.1} parent=1 // pred_check_branch
      %11 = sbr.rel (0) target = $region5
    $region4: #{tpu_custom_call.1} parent=1 // pred_region
      %13 = vsyncadd [#allocation3], 0
      %s14 = sshll.u32 %s0, 4
      %s15 = int_to_ptr.hbm [resolvable:$true] %s14
      %s16 = sshll.u32 [#allocation2], 4
      %s17 = int_to_ptr.vmem [resolvable:$true] %s16
      %22 = dma.hbm_to_vmem [thread:$0]  %s15, 256, %s17, [#allocation3], 128, 128, 8
    $region5: #{tpu_custom_call.1} parent=1 // pred_fallthru
      _
    // Predicated region
    $region6: #{tpu_custom_call.1} parent=1 // pred_check
      _
    $region7: #{tpu_custom_call.1} parent=1 // pred_check_branch
      %24 = sbr.rel (0) target = $region9
    $region8: #{tpu_custom_call.1} parent=1 // pred_region
      %26 = vsyncadd [#allocation6], 0
      %s28 = sshll.u32 %s1, 4
      %s29 = int_to_ptr.hbm [resolvable:$true] %s28
      %s30 = sshll.u32 [#allocation5], 4
      %s31 = int_to_ptr.vmem [resolvable:$true] %s30
      %33 = dma.hbm_to_vmem [thread:$0]  %s29, 16, %s31, [#allocation6]
    $region9: #{tpu_custom_call.1} parent=1 // pred_fallthru
      _
    // Predicated region
    $region10: #{tpu_custom_call.1} parent=1 // pred_check
      _
    $region11: #{tpu_custom_call.1} parent=1 // pred_check_branch
      %35 = sbr.rel (0) target = $region13
    $region12: #{tpu_custom_call.1} parent=1 // pred_region
      %37 = dma.done [#allocation3], 256
    $region13: #{tpu_custom_call.1} parent=1 // pred_fallthru
      _
    // Predicated region
    $region14: #{tpu_custom_call.1} parent=1 // pred_check
      _
    $region15: #{tpu_custom_call.1} parent=1 // pred_check_branch
      %39 = sbr.rel (0) target = $region17
    $region16: #{tpu_custom_call.1} parent=1 // pred_region
      %41 = dma.done [#allocation6], 16
    $region17: #{tpu_custom_call.1} parent=1 // pred_fallthru
      _
    %v42 = vld [vmem:[#allocation2] sm:$0xff]
    %v43 = vld [vmem:[#allocation2 + $0x8] sm:$0xff]
    %v44 = vmul.f32 %v42, %v42
    %v45 = vmul.f32 %v43, %v43
    %vm46 = vcmask 261120
    %v47 = vsel %vm46, %v44, 0.0
    %48 = vadd.xlane.f32.xlu0 %v47
    %v49 = vpop.xlane.xlu0 %48
    %v50 = vsel %vm46, %v45, 0.0
    %51 = vadd.xlane.f32.xlu0 %v50
    %v52 = vpop.xlane.xlu0 %51
    %v53 = vmax.f32 %v49, 1e-24
    %v54 = vmax.f32 %v52, 1e-24
    %v55 = vrsqrt.pop %v53
    %v56 = vmul.f32 %v55, %v53
    %v57 = vmul.f32 %v56, %v55
    %v58 = vmul.f32 0.5, %v57
    %v59 = vsub.f32 1.5, %v58
    %v60 = vmul.f32 %v55, %v59
    %vm61 = vweird.f32 %v53
    %vm62 = vweird.f32 %v55
    %vm63 = vmor %vm61, %vm62
    %v64 = vsel %vm63, %v55, %v60
    %v65 = vrsqrt.pop %v54
    %v66 = vmul.f32 %v65, %v54
    %v67 = vmul.f32 %v66, %v65
    %v68 = vmul.f32 0.5, %v67
    %v69 = vsub.f32 1.5, %v68
    %v70 = vmul.f32 %v65, %v69
    %vm71 = vweird.f32 %v54
    %vm72 = vweird.f32 %v65
    %vm73 = vmor %vm71, %vm72
    %v74 = vsel %vm73, %v65, %v70
    %v75 = vld [vmem:[#allocation5] sm:$0x1]
    %v76 = vmul.f32 %v42, %v64
    %v77 = vmul.f32 %v43, %v74
    %v79 = vperm.slane %v75, 0
    %v81 = vmul.f32 %v76, %v79
    %v82 = vmul.f32 %v77, %v79
    %83 = vst.msk [vmem:[#allocation7] sm:$0xff] %vm46, %v81
    %84 = vst.msk [vmem:[#allocation7 + $0x8] sm:$0xff] %vm46, %v82
    // Predicated region
    $region18: #{tpu_custom_call.1} parent=1 // pred_check
      _
    $region19: #{tpu_custom_call.1} parent=1 // pred_check_branch
      %86 = sbr.rel (0) target = $region21
    $region20: #{tpu_custom_call.1} parent=1 // pred_region
      %88 = vsyncadd [#allocation4], 0
      %s89 = sshll.u32 [#allocation7], 4
      %s90 = int_to_ptr.vmem [resolvable:$true] %s89
      %s91 = sshll.u32 %s2, 4
      %s92 = int_to_ptr.hbm [resolvable:$true] %s91
      %97 = dma.vmem_to_hbm [thread:$0]  %s90, 256, %s92, [#allocation4], 128, 128, 8
    $region21: #{tpu_custom_call.1} parent=1 // pred_fallthru
      _
    // Predicated region
    $region22: #{tpu_custom_call.1} parent=1 // pred_check
      _
    $region23: #{tpu_custom_call.1} parent=1 // pred_check_branch
      %99 = sbr.rel (0) target = $region25
    $region24: #{tpu_custom_call.1} parent=1 // pred_region
      %101 = dma.done [#allocation4], 256
    $region25: #{tpu_custom_call.1} parent=1 // pred_fallthru
      _
    %102 = vsyncpa [#allocation3], 1
    %103 = vsyncpa [#allocation6], 1
    %104 = vsyncpa [#allocation4], 1

</llo_original>
